<compile_context>
chip_gen: v6e
topology: v6e:2x2x1
jax: 0.10.0
libtpu: 0.0.40
codegen_flags: <defaults>
</compile_context>

<pallas_src>
import math
from functools import partial

import jax
import jax.numpy as jnp
from jax.experimental import pallas as pl
from jax.experimental.pallas import tpu as pltpu

# GameNAS / DARTS-style primitive list -> determines the Linear input width.
PRIMITIVES = [
    "none", "max_pool_3x3", "avg_pool_3x3", "skip_connect",
    "sep_conv_3x3", "sep_conv_5x5", "dil_conv_3x3", "dil_conv_5x5",
]


# ------------------------------ fused kernel ------------------------------- #

def _encoder_fused_kernel(flatids_ref,   # VMEM (B, P, 1) int32: p*V + ids[b,p]
                          table_ref,     # VMEM (P*V, H)  fused Embedding@Linear
                          blin_ref,      # VMEM (1, H)    f32 Linear bias
                          wih_ref,       # VMEM (L, H, 3H) x-side gate weights
                          whh_ref,       # VMEM (L, H, 3H) h-side gate weights
                          bi_ref,        # VMEM (L, 1, 3H) f32: b_ih (+ b_hh for r,z)
                          bhn_ref,       # VMEM (L, 1, H)  f32: b_hn (n gate only)
                          hid_ref,       # VMEM (L, B, H)  f32 previous hidden
                          hidnew_ref,    # VMEM (L, B, H)  f32 new hidden
                          *, batch_size, num_prims, vocab, hidden_size,
                          num_layer):
    B, P, V, H, L = batch_size, num_prims, vocab, hidden_size, num_layer
    PV = P * V

    # 1) Multi-hot selector (B, P*V): mh[b, p*V + ids[b,p]] = 1.
    #    Fully vectorized: one lane-broadcast compare + one sublane reduce
    #    (replaces the former 16-step scalar SMEM gather loop).
    flat = flatids_ref[...]                                           # (B,P,1)
    col = jax.lax.broadcasted_iota(jnp.int32, (B, P, PV), 2)          # (B,P,PV)
    hit = (flat == col).astype(jnp.float32)                           # (B,P,PV)
    mh = jnp.sum(hit, axis=1).astype(table_ref.dtype)                 # (B,PV)

    # 2) Fused Embedding + Linear + ReLU: ONE MXU matmul (B,PV)@(PV,H).
    x = jnp.dot(mh, table_ref[...], preferred_element_type=jnp.float32)
    x = jnp.maximum(x + blin_ref[...], 0.0)                           # (B,H) f32

    # 3) Stacked GRU cells (seq_len == 1), statically unrolled over layers.
    #    PyTorch gate order r, z, n:
    #      r  = sigmoid(W_ir x + b_ir + W_hr h + b_hr)
    #      z  = sigmoid(W_iz x + b_iz + W_hz h + b_hz)
    #      n  = tanh   (W_in x + b_in + r * (W_hn h + b_hn))
    #      h' = (1 - z) * n + z * h
    #    2 N-fused matmuls per layer; gate math stays fp32.
    for l in range(L):
        h = hid_ref[l]                                                # (B,H) f32
        gi = jnp.dot(x.astype(wih_ref.dtype), wih_ref[l],
                     preferred_element_type=jnp.float32) + bi_ref[l]  # (B,3H)
        gh = jnp.dot(h.astype(whh_ref.dtype), whh_ref[l],
                     preferred_element_type=jnp.float32)              # (B,3H)
        r = jax.nn.sigmoid(gi[:, :H] + gh[:, :H])
        z = jax.nn.sigmoid(gi[:, H:2 * H] + gh[:, H:2 * H])
        n = jnp.tanh(gi[:, 2 * H:] + r * (gh[:, 2 * H:] + bhn_ref[l]))
        h_new = (1.0 - z) * n + z * h
        hidnew_ref[l] = h_new
        x = h_new                                                     # feed next layer


# ------------------------------- wrapper ----------------------------------- #

@partial(jax.jit, static_argnames=("num_layer",))
def encoder_forward(packed, input_ids, hidden, num_layer):
    """input_ids: (B, P) int32, hidden: (L, B, H) f32 -> (output (1,B,H), hidden (L,B,H))."""
    B, P = input_ids.shape
    PV, H = packed["table"].shape
    V = PV // P
    L = num_layer

    # Flat multi-hot indices, computed once in the (trivial) XLA prologue.
    flat_ids = (input_ids.astype(jnp.int32)
                + jnp.arange(P, dtype=jnp.int32)[None, :] * V).reshape(B, P, 1)

    kernel = partial(_encoder_fused_kernel, batch_size=B, num_prims=P,
                     vocab=V, hidden_size=H, num_layer=L)

    hid_new = pl.pallas_call(
        kernel,
        out_shape=jax.ShapeDtypeStruct((L, B, H), jnp.float32),
        grid_spec=pltpu.PrefetchScalarGridSpec(
            num_scalar_prefetch=0,
            grid=(1,),
            in_specs=[
                pl.BlockSpec((B, P, 1),       lambda i: (0, 0, 0)),
                pl.BlockSpec((PV, H),         lambda i: (0, 0)),
                pl.BlockSpec((1, H),          lambda i: (0, 0)),
                pl.BlockSpec((L, H, 3 * H),   lambda i: (0, 0, 0)),
                pl.BlockSpec((L, H, 3 * H),   lambda i: (0, 0, 0)),
                pl.BlockSpec((L, 1, 3 * H),   lambda i: (0, 0, 0)),
                pl.BlockSpec((L, 1, H),       lambda i: (0, 0, 0)),
                pl.BlockSpec((L, B, H),       lambda i: (0, 0, 0)),
            ],
            out_specs=pl.BlockSpec((L, B, H), lambda i: (0, 0, 0)),
        ),
        # In-place hidden-state update (input 7 = `hidden`); caller should
        # donate the hidden buffer in a real decode loop to avoid the copy.
        input_output_aliases={7: 0},
        compiler_params=pltpu.CompilerParams(
            dimension_semantics=("arbitrary",)),
    )(flat_ids, packed["table"], packed["linear_b"], packed["gru_wih"],
      packed["gru_whh"], packed["gru_bi"], packed["gru_bhn"], hidden)

    # GRU "output" for seq_len==1 is the top layer's new hidden state.
    return hid_new[L - 1:L], hid_new


# ---------------------- parameter init / packing --------------------------- #

def init_encoder_params(key, input_size, hidden_size, num_layer):
    """PyTorch-layout parameters (same shapes/ordering as the nn.Module)."""
    Pn = len(PRIMITIVES)
    keys = jax.random.split(key, 3 + 4 * num_layer)
    k = 1.0 / math.sqrt(hidden_size)
    params = {
        # nn.Embedding(input_size, hidden_size)
        "embedding": jax.random.normal(keys[0], (input_size, hidden_size), jnp.float32),
        # nn.Linear(hidden_size * P, hidden_size): weight (out, in), bias (out,)
        "linear_w": jax.random.uniform(keys[1], (hidden_size, hidden_size * Pn),
                                       jnp.float32, -k, k),
        "linear_b": jax.random.uniform(keys[2], (hidden_size,), jnp.float32, -k, k),
    }
    # nn.GRU(hidden_size, hidden_size, num_layer): per layer
    #   weight_ih (3H, H), weight_hh (3H, H), bias_ih (3H,), bias_hh (3H,)
    for l in range(num_layer):
        kk = keys[3 + 4 * l: 3 + 4 * (l + 1)]
        params[f"weight_ih_l{l}"] = jax.random.uniform(
            kk[0], (3 * hidden_size, hidden_size), jnp.float32, -k, k)
        params[f"weight_hh_l{l}"] = jax.random.uniform(
            kk[1], (3 * hidden_size, hidden_size), jnp.float32, -k, k)
        params[f"bias_ih_l{l}"] = jax.random.uniform(
            kk[2], (3 * hidden_size,), jnp.float32, -k, k)
        params[f"bias_hh_l{l}"] = jax.random.uniform(
            kk[3], (3 * hidden_size,), jnp.float32, -k, k)
    return params


def pack_params(params, hidden_size, num_layer, compute_dtype=jnp.bfloat16):
    """Repack PyTorch-layout weights into the kernel's fused layout.

    * table[p*V + v, :] = embedding[v, :] @ W_p  (Embedding+Linear folded).
    * GRU weights stacked as (L, H, 3H) (x @ W), gate order r|z|n along N.
    * bias_ih + bias_hh pre-added for r,z; b_hn kept separate for the n gate.
    * Matmul operands cast to `compute_dtype` (bf16 default); biases stay f32.
    """
    H = hidden_size
    P = len(PRIMITIVES)
    emb = params["embedding"]                              # (V, H)
    lw = params["linear_w"]                                # (H, P*H), cols ordered [p, h]
    # W_p[h_in, h_out] = lw[h_out, p*H + h_in]
    w_stack = jnp.transpose(lw.reshape(H, P, H), (1, 2, 0))            # (P, H, H)
    table = jnp.einsum("vh,phj->pvj", emb, w_stack).reshape(P * emb.shape[0], H)

    wih, whh, bi, bhn = [], [], [], []
    for l in range(num_layer):
        w_i = params[f"weight_ih_l{l}"]                    # (3H, H), rows [r; z; n]
        w_h = params[f"weight_hh_l{l}"]
        b_i = params[f"bias_ih_l{l}"]
        b_h = params[f"bias_hh_l{l}"]
        wih.append(w_i.T)                                  # (H, 3H), x @ w
        whh.append(w_h.T)                                  # (H, 3H), h @ w
        bi.append(b_i.at[:2 * H].add(b_h[:2 * H])[None, :])   # (1, 3H) fused r,z bias
        bhn.append(b_h[2 * H:][None, :])                   # (1, H)   n-gate hidden bias
    return {
        "table":    table.astype(compute_dtype),           # (P*V, H)
        "linear_b": params["linear_b"][None, :].astype(jnp.float32),   # (1, H)
        "gru_wih":  jnp.stack(wih, 0).astype(compute_dtype),           # (L, H, 3H)
        "gru_whh":  jnp.stack(whh, 0).astype(compute_dtype),           # (L, H, 3H)
        "gru_bi":   jnp.stack(bi, 0).astype(jnp.float32),              # (L, 1, 3H)
        "gru_bhn":  jnp.stack(bhn, 0).astype(jnp.float32),             # (L, 1, H)
    }


# ------------------------- pure-JAX reference ------------------------------ #

def _reference_forward(params, input_ids, hidden, num_layer):
    B = input_ids.shape[0]
    H = hidden.shape[-1]
    emb = params["embedding"][input_ids].reshape(B, -1)
    x = jnp.maximum(emb @ params["linear_w"].T + params["linear_b"], 0.0)
    new_hidden = []
    for l in range(num_layer):
        h = hidden[l]
        gi = x @ params[f"weight_ih_l{l}"].T + params[f"bias_ih_l{l}"]
        gh = h @ params[f"weight_hh_l{l}"].T + params[f"bias_hh_l{l}"]
        r = jax.nn.sigmoid(gi[:, :H] + gh[:, :H])
        z = jax.nn.sigmoid(gi[:, H:2 * H] + gh[:, H:2 * H])
        n = jnp.tanh(gi[:, 2 * H:] + r * gh[:, 2 * H:])
        h = (1.0 - z) * n + z * h
        new_hidden.append(h)
        x = h
    return x[None], jnp.stack(new_hidden, 0)


if __name__ == "__main__":
    input_size = 10      # embedding vocab
    hidden_size = 32
    num_layer = 2
    batch_size = 2
    P = len(PRIMITIVES)

    root = jax.random.PRNGKey(0)
    k_params, k_inp = jax.random.split(root)
    params = init_encoder_params(k_params, input_size, hidden_size, num_layer)

    input_ids = jax.random.randint(k_inp, (batch_size, P), 0, input_size,
                                   dtype=jnp.int32)
    hidden0 = jnp.zeros((num_layer, batch_size, hidden_size), jnp.float32)  # initHidden()

    ref_out, ref_hid = _reference_forward(params, input_ids, hidden0, num_layer)

    # ---- fp32 weights: tight functional check vs the PyTorch-equivalent ref.
    packed_f32 = pack_params(params, hidden_size, num_layer, jnp.float32)
    out32, hid32 = jax.block_until_ready(
        encoder_forward(packed_f32, input_ids, hidden0, num_layer))
    assert out32.shape == (1, batch_size, hidden_size)
    assert hid32.shape == (num_layer, batch_size, hidden_size)
    assert jnp.allclose(out32, ref_out, atol=1e-4, rtol=1e-4)
    assert jnp.allclose(hid32, ref_hid, atol=1e-4, rtol=1e-4)

    # ---- bf16 weights (MXU-native fast path, fp32 accum + fp32 gate math).
    packed_bf16 = pack_params(params, hidden_size, num_layer, jnp.bfloat16)
    out16, hid16 = jax.block_until_ready(
        encoder_forward(packed_bf16, input_ids, hidden0, num_layer))
    assert jnp.allclose(out16, ref_out, atol=3e-2, rtol=3e-2)
    assert jnp.allclose(hid16, ref_hid, atol=3e-2, rtol=3e-2)

    print("KERNEL_OK")
</pallas_src>

<mosaic_0001>
module attributes {stable_mosaic.version = 11 : i64} {
  func.func @_encoder_fused_kernel(%arg0: i32, %arg1: memref<2x8x1xi32, #tpu.memory_space<vmem>>, %arg2: memref<80x32xf32, #tpu.memory_space<vmem>>, %arg3: memref<1x32xf32, #tpu.memory_space<vmem>>, %arg4: memref<2x32x96xf32, #tpu.memory_space<vmem>>, %arg5: memref<2x32x96xf32, #tpu.memory_space<vmem>>, %arg6: memref<2x1x96xf32, #tpu.memory_space<vmem>>, %arg7: memref<2x1x32xf32, #tpu.memory_space<vmem>>, %arg8: memref<2x2x32xf32, #tpu.memory_space<vmem>>, %arg9: memref<2x2x32xf32, #tpu.memory_space<vmem>>) attributes {dimension_semantics = [#tpu.dimension_semantics<arbitrary>], iteration_bounds = array<i64: 1>, scalar_prefetch = 0 : i64, scratch_operands = 0 : i64, tpu.core_type = #tpu.core_type<tc>, window_params = [{pipeline_mode = #tpu.pipeline_mode<synchronous>, transform_indices = @transform_0, window_bounds = array<i64: 2, 8, 1>}, {pipeline_mode = #tpu.pipeline_mode<synchronous>, transform_indices = @transform_1, window_bounds = array<i64: 80, 32>}, {pipeline_mode = #tpu.pipeline_mode<synchronous>, transform_indices = @transform_2, window_bounds = array<i64: 1, 32>}, {pipeline_mode = #tpu.pipeline_mode<synchronous>, transform_indices = @transform_3, window_bounds = array<i64: 2, 32, 96>}, {pipeline_mode = #tpu.pipeline_mode<synchronous>, transform_indices = @transform_4, window_bounds = array<i64: 2, 32, 96>}, {pipeline_mode = #tpu.pipeline_mode<synchronous>, transform_indices = @transform_5, window_bounds = array<i64: 2, 1, 96>}, {pipeline_mode = #tpu.pipeline_mode<synchronous>, transform_indices = @transform_6, window_bounds = array<i64: 2, 1, 32>}, {pipeline_mode = #tpu.pipeline_mode<synchronous>, transform_indices = @transform_7, window_bounds = array<i64: 2, 2, 32>}, {pipeline_mode = #tpu.pipeline_mode<synchronous>, transform_indices = @transform_8, window_bounds = array<i64: 2, 2, 32>}]} {
    %c0 = arith.constant 0 : index
    %c0_0 = arith.constant 0 : index
    %c0_1 = arith.constant 0 : index
    %0 = vector.load %arg1[%c0, %c0_0, %c0_1] : memref<2x8x1xi32, #tpu.memory_space<vmem>>, vector<2x8x1xi32>
    %1 = tpu.iota {dimensions = array<i32: 2>} : vector<2x8x80xi32>
    %2 = vector.broadcast %0 : vector<2x8x1xi32> to vector<2x8x80xi32>
    %3 = arith.cmpi eq, %2, %1 : vector<2x8x80xi32>
    %4 = arith.extui %3 : vector<2x8x80xi1> to vector<2x8x80xi32>
    %5 = arith.sitofp %4 : vector<2x8x80xi32> to vector<2x8x80xf32>
    %cst = arith.constant dense<0.000000e+00> : vector<2x80xf32>
    %6 = vector.multi_reduction <add>, %5, %cst [1] : vector<2x8x80xf32> to vector<2x80xf32>
    %c0_2 = arith.constant 0 : index
    %c0_3 = arith.constant 0 : index
    %7 = vector.load %arg2[%c0_2, %c0_3] : memref<80x32xf32, #tpu.memory_space<vmem>>, vector<80x32xf32>
    %cst_4 = arith.constant dense<0.000000e+00> : vector<2x32xf32>
    %8 = tpu.matmul %6, %7, %cst_4 {dimension_numbers = #tpu.dot_dimension_numbers<[1], [0], [0], [1], [0, 0, 1, 1], [], []>} : vector<2x80xf32>, vector<80x32xf32>, vector<2x32xf32> -> vector<2x32xf32>
    %c0_5 = arith.constant 0 : index
    %c0_6 = arith.constant 0 : index
    %9 = vector.load %arg3[%c0_5, %c0_6] : memref<1x32xf32, #tpu.memory_space<vmem>>, vector<1x32xf32>
    %10 = vector.broadcast %9 : vector<1x32xf32> to vector<2x32xf32>
    %11 = arith.addf %8, %10 : vector<2x32xf32>
    %cst_7 = arith.constant 0.000000e+00 : f32
    %12 = vector.broadcast %cst_7 : f32 to vector<2x32xf32>
    %13 = arith.maximumf %11, %12 : vector<2x32xf32>
    %c0_8 = arith.constant 0 : index
    %c0_9 = arith.constant 0 : index
    %c0_10 = arith.constant 0 : index
    %14 = vector.load %arg8[%c0_8, %c0_9, %c0_10] : memref<2x2x32xf32, #tpu.memory_space<vmem>>, vector<1x2x32xf32>
    %15 = vector.shape_cast %14 : vector<1x2x32xf32> to vector<2x32xf32>
    %c0_11 = arith.constant 0 : index
    %c0_12 = arith.constant 0 : index
    %c0_13 = arith.constant 0 : index
    %16 = vector.load %arg4[%c0_11, %c0_12, %c0_13] : memref<2x32x96xf32, #tpu.memory_space<vmem>>, vector<1x32x96xf32>
    %17 = vector.shape_cast %16 : vector<1x32x96xf32> to vector<32x96xf32>
    %cst_14 = arith.constant dense<0.000000e+00> : vector<2x96xf32>
    %18 = tpu.matmul %13, %17, %cst_14 {dimension_numbers = #tpu.dot_dimension_numbers<[1], [0], [0], [1], [0, 0, 1, 1], [], []>} : vector<2x32xf32>, vector<32x96xf32>, vector<2x96xf32> -> vector<2x96xf32>
    %c0_15 = arith.constant 0 : index
    %c0_16 = arith.constant 0 : index
    %c0_17 = arith.constant 0 : index
    %19 = vector.load %arg6[%c0_15, %c0_16, %c0_17] : memref<2x1x96xf32, #tpu.memory_space<vmem>>, vector<1x1x96xf32>
    %20 = vector.shape_cast %19 : vector<1x1x96xf32> to vector<1x96xf32>
    %21 = vector.broadcast %20 : vector<1x96xf32> to vector<2x96xf32>
    %22 = arith.addf %18, %21 : vector<2x96xf32>
    %c0_18 = arith.constant 0 : index
    %c0_19 = arith.constant 0 : index
    %c0_20 = arith.constant 0 : index
    %23 = vector.load %arg5[%c0_18, %c0_19, %c0_20] : memref<2x32x96xf32, #tpu.memory_space<vmem>>, vector<1x32x96xf32>
    %24 = vector.shape_cast %23 : vector<1x32x96xf32> to vector<32x96xf32>
    %cst_21 = arith.constant dense<0.000000e+00> : vector<2x96xf32>
    %25 = tpu.matmul %15, %24, %cst_21 {dimension_numbers = #tpu.dot_dimension_numbers<[1], [0], [0], [1], [0, 0, 1, 1], [], []>} : vector<2x32xf32>, vector<32x96xf32>, vector<2x96xf32> -> vector<2x96xf32>
    %26 = vector.extract_strided_slice %22 {offsets = [0, 0], sizes = [2, 32], strides = [1, 1]} : vector<2x96xf32> to vector<2x32xf32>
    %27 = vector.extract_strided_slice %25 {offsets = [0, 0], sizes = [2, 32], strides = [1, 1]} : vector<2x96xf32> to vector<2x32xf32>
    %28 = arith.addf %26, %27 : vector<2x32xf32>
    %29 = arith.negf %28 : vector<2x32xf32>
    %30 = math.exp %29 : vector<2x32xf32>
    %cst_22 = arith.constant 1.000000e+00 : f32
    %31 = vector.broadcast %cst_22 : f32 to vector<2x32xf32>
    %32 = arith.addf %31, %30 : vector<2x32xf32>
    %33 = arith.divf %31, %32 : vector<2x32xf32>
    %34 = vector.extract_strided_slice %22 {offsets = [0, 32], sizes = [2, 32], strides = [1, 1]} : vector<2x96xf32> to vector<2x32xf32>
    %35 = vector.extract_strided_slice %25 {offsets = [0, 32], sizes = [2, 32], strides = [1, 1]} : vector<2x96xf32> to vector<2x32xf32>
    %36 = arith.addf %34, %35 : vector<2x32xf32>
    %37 = arith.negf %36 : vector<2x32xf32>
    %38 = math.exp %37 : vector<2x32xf32>
    %cst_23 = arith.constant 1.000000e+00 : f32
    %39 = vector.broadcast %cst_23 : f32 to vector<2x32xf32>
    %40 = arith.addf %39, %38 : vector<2x32xf32>
    %41 = arith.divf %39, %40 : vector<2x32xf32>
    %42 = vector.extract_strided_slice %22 {offsets = [0, 64], sizes = [2, 32], strides = [1, 1]} : vector<2x96xf32> to vector<2x32xf32>
    %43 = vector.extract_strided_slice %25 {offsets = [0, 64], sizes = [2, 32], strides = [1, 1]} : vector<2x96xf32> to vector<2x32xf32>
    %c0_24 = arith.constant 0 : index
    %c0_25 = arith.constant 0 : index
    %c0_26 = arith.constant 0 : index
    %44 = vector.load %arg7[%c0_24, %c0_25, %c0_26] : memref<2x1x32xf32, #tpu.memory_space<vmem>>, vector<1x1x32xf32>
    %45 = vector.shape_cast %44 : vector<1x1x32xf32> to vector<1x32xf32>
    %46 = vector.broadcast %45 : vector<1x32xf32> to vector<2x32xf32>
    %47 = arith.addf %43, %46 : vector<2x32xf32>
    %48 = arith.mulf %33, %47 : vector<2x32xf32>
    %49 = arith.addf %42, %48 : vector<2x32xf32>
    %50 = math.tanh %49 : vector<2x32xf32>
    %cst_27 = arith.constant 1.000000e+00 : f32
    %51 = vector.broadcast %cst_27 : f32 to vector<2x32xf32>
    %52 = arith.subf %51, %41 : vector<2x32xf32>
    %53 = arith.mulf %52, %50 : vector<2x32xf32>
    %54 = arith.mulf %41, %15 : vector<2x32xf32>
    %55 = arith.addf %53, %54 : vector<2x32xf32>
    %c0_28 = arith.constant 0 : index
    %c0_29 = arith.constant 0 : index
    %c0_30 = arith.constant 0 : index
    %56 = vector.load %arg9[%c0_28, %c0_29, %c0_30] : memref<2x2x32xf32, #tpu.memory_space<vmem>>, vector<1x2x32xf32>
    %57 = vector.shape_cast %56 : vector<1x2x32xf32> to vector<2x32xf32>
    %58 = vector.shape_cast %55 : vector<2x32xf32> to vector<1x2x32xf32>
    tpu.vector_store %arg9[%c0_28, %c0_29, %c0_30], %58 {strides = array<i32>} : memref<2x2x32xf32, #tpu.memory_space<vmem>>, vector<1x2x32xf32>,
    %c1 = arith.constant 1 : index
    %c0_31 = arith.constant 0 : index
    %c0_32 = arith.constant 0 : index
    %59 = vector.load %arg8[%c1, %c0_31, %c0_32] : memref<2x2x32xf32, #tpu.memory_space<vmem>>, vector<1x2x32xf32>
    %60 = vector.shape_cast %59 : vector<1x2x32xf32> to vector<2x32xf32>
    %c1_33 = arith.constant 1 : index
    %c0_34 = arith.constant 0 : index
    %c0_35 = arith.constant 0 : index
    %61 = vector.load %arg4[%c1_33, %c0_34, %c0_35] : memref<2x32x96xf32, #tpu.memory_space<vmem>>, vector<1x32x96xf32>
    %62 = vector.shape_cast %61 : vector<1x32x96xf32> to vector<32x96xf32>
    %cst_36 = arith.constant dense<0.000000e+00> : vector<2x96xf32>
    %63 = tpu.matmul %55, %62, %cst_36 {dimension_numbers = #tpu.dot_dimension_numbers<[1], [0], [0], [1], [0, 0, 1, 1], [], []>} : vector<2x32xf32>, vector<32x96xf32>, vector<2x96xf32> -> vector<2x96xf32>
    %c1_37 = arith.constant 1 : index
    %c0_38 = arith.constant 0 : index
    %c0_39 = arith.constant 0 : index
    %64 = vector.load %arg6[%c1_37, %c0_38, %c0_39] : memref<2x1x96xf32, #tpu.memory_space<vmem>>, vector<1x1x96xf32>
    %65 = vector.shape_cast %64 : vector<1x1x96xf32> to vector<1x96xf32>
    %66 = vector.broadcast %65 : vector<1x96xf32> to vector<2x96xf32>
    %67 = arith.addf %63, %66 : vector<2x96xf32>
    %c1_40 = arith.constant 1 : index
    %c0_41 = arith.constant 0 : index
    %c0_42 = arith.constant 0 : index
    %68 = vector.load %arg5[%c1_40, %c0_41, %c0_42] : memref<2x32x96xf32, #tpu.memory_space<vmem>>, vector<1x32x96xf32>
    %69 = vector.shape_cast %68 : vector<1x32x96xf32> to vector<32x96xf32>
    %cst_43 = arith.constant dense<0.000000e+00> : vector<2x96xf32>
    %70 = tpu.matmul %60, %69, %cst_43 {dimension_numbers = #tpu.dot_dimension_numbers<[1], [0], [0], [1], [0, 0, 1, 1], [], []>} : vector<2x32xf32>, vector<32x96xf32>, vector<2x96xf32> -> vector<2x96xf32>
    %71 = vector.extract_strided_slice %67 {offsets = [0, 0], sizes = [2, 32], strides = [1, 1]} : vector<2x96xf32> to vector<2x32xf32>
    %72 = vector.extract_strided_slice %70 {offsets = [0, 0], sizes = [2, 32], strides = [1, 1]} : vector<2x96xf32> to vector<2x32xf32>
    %73 = arith.addf %71, %72 : vector<2x32xf32>
    %74 = arith.negf %73 : vector<2x32xf32>
    %75 = math.exp %74 : vector<2x32xf32>
    %cst_44 = arith.constant 1.000000e+00 : f32
    %76 = vector.broadcast %cst_44 : f32 to vector<2x32xf32>
    %77 = arith.addf %76, %75 : vector<2x32xf32>
    %78 = arith.divf %76, %77 : vector<2x32xf32>
    %79 = vector.extract_strided_slice %67 {offsets = [0, 32], sizes = [2, 32], strides = [1, 1]} : vector<2x96xf32> to vector<2x32xf32>
    %80 = vector.extract_strided_slice %70 {offsets = [0, 32], sizes = [2, 32], strides = [1, 1]} : vector<2x96xf32> to vector<2x32xf32>
    %81 = arith.addf %79, %80 : vector<2x32xf32>
    %82 = arith.negf %81 : vector<2x32xf32>
    %83 = math.exp %82 : vector<2x32xf32>
    %cst_45 = arith.constant 1.000000e+00 : f32
    %84 = vector.broadcast %cst_45 : f32 to vector<2x32xf32>
    %85 = arith.addf %84, %83 : vector<2x32xf32>
    %86 = arith.divf %84, %85 : vector<2x32xf32>
    %87 = vector.extract_strided_slice %67 {offsets = [0, 64], sizes = [2, 32], strides = [1, 1]} : vector<2x96xf32> to vector<2x32xf32>
    %88 = vector.extract_strided_slice %70 {offsets = [0, 64], sizes = [2, 32], strides = [1, 1]} : vector<2x96xf32> to vector<2x32xf32>
    %c1_46 = arith.constant 1 : index
    %c0_47 = arith.constant 0 : index
    %c0_48 = arith.constant 0 : index
    %89 = vector.load %arg7[%c1_46, %c0_47, %c0_48] : memref<2x1x32xf32, #tpu.memory_space<vmem>>, vector<1x1x32xf32>
    %90 = vector.shape_cast %89 : vector<1x1x32xf32> to vector<1x32xf32>
    %91 = vector.broadcast %90 : vector<1x32xf32> to vector<2x32xf32>
    %92 = arith.addf %88, %91 : vector<2x32xf32>
    %93 = arith.mulf %78, %92 : vector<2x32xf32>
    %94 = arith.addf %87, %93 : vector<2x32xf32>
    %95 = math.tanh %94 : vector<2x32xf32>
    %cst_49 = arith.constant 1.000000e+00 : f32
    %96 = vector.broadcast %cst_49 : f32 to vector<2x32xf32>
    %97 = arith.subf %96, %86 : vector<2x32xf32>
    %98 = arith.mulf %97, %95 : vector<2x32xf32>
    %99 = arith.mulf %86, %60 : vector<2x32xf32>
    %100 = arith.addf %98, %99 : vector<2x32xf32>
    %c1_50 = arith.constant 1 : index
    %c0_51 = arith.constant 0 : index
    %c0_52 = arith.constant 0 : index
    %101 = vector.load %arg9[%c1_50, %c0_51, %c0_52] : memref<2x2x32xf32, #tpu.memory_space<vmem>>, vector<1x2x32xf32>
    %102 = vector.shape_cast %101 : vector<1x2x32xf32> to vector<2x32xf32>
    %103 = vector.shape_cast %100 : vector<2x32xf32> to vector<1x2x32xf32>
    tpu.vector_store %arg9[%c1_50, %c0_51, %c0_52], %103 {strides = array<i32>} : memref<2x2x32xf32, #tpu.memory_space<vmem>>, vector<1x2x32xf32>,
    return
  }
  func.func @transform_0(%arg0: i32) -> (i32, i32, i32) {
    %c0_i32 = arith.constant 0 : i32
    %c0_i32_0 = arith.constant 0 : i32
    %c0_i32_1 = arith.constant 0 : i32
    %c0_i32_2 = arith.constant 0 : i32
    return %c0_i32, %c0_i32_0, %c0_i32_1 : i32, i32, i32
  }
  func.func @transform_1(%arg0: i32) -> (i32, i32) {
    %c0_i32 = arith.constant 0 : i32
    %c0_i32_0 = arith.constant 0 : i32
    %c0_i32_1 = arith.constant 0 : i32
    return %c0_i32, %c0_i32_0 : i32, i32
  }
  func.func @transform_2(%arg0: i32) -> (i32, i32) {
    %c0_i32 = arith.constant 0 : i32
    %c0_i32_0 = arith.constant 0 : i32
    %c0_i32_1 = arith.constant 0 : i32
    return %c0_i32, %c0_i32_0 : i32, i32
  }
  func.func @transform_3(%arg0: i32) -> (i32, i32, i32) {
    %c0_i32 = arith.constant 0 : i32
    %c0_i32_0 = arith.constant 0 : i32
    %c0_i32_1 = arith.constant 0 : i32
    %c0_i32_2 = arith.constant 0 : i32
    return %c0_i32, %c0_i32_0, %c0_i32_1 : i32, i32, i32
  }
  func.func @transform_4(%arg0: i32) -> (i32, i32, i32) {
    %c0_i32 = arith.constant 0 : i32
    %c0_i32_0 = arith.constant 0 : i32
    %c0_i32_1 = arith.constant 0 : i32
    %c0_i32_2 = arith.constant 0 : i32
    return %c0_i32, %c0_i32_0, %c0_i32_1 : i32, i32, i32
  }
  func.func @transform_5(%arg0: i32) -> (i32, i32, i32) {
    %c0_i32 = arith.constant 0 : i32
    %c0_i32_0 = arith.constant 0 : i32
    %c0_i32_1 = arith.constant 0 : i32
    %c0_i32_2 = arith.constant 0 : i32
    return %c0_i32, %c0_i32_0, %c0_i32_1 : i32, i32, i32
  }
  func.func @transform_6(%arg0: i32) -> (i32, i32, i32) {
    %c0_i32 = arith.constant 0 : i32
    %c0_i32_0 = arith.constant 0 : i32
    %c0_i32_1 = arith.constant 0 : i32
    %c0_i32_2 = arith.constant 0 : i32
    return %c0_i32, %c0_i32_0, %c0_i32_1 : i32, i32, i32
  }
  func.func @transform_7(%arg0: i32) -> (i32, i32, i32) {
    %c0_i32 = arith.constant 0 : i32
    %c0_i32_0 = arith.constant 0 : i32
    %c0_i32_1 = arith.constant 0 : i32
    %c0_i32_2 = arith.constant 0 : i32
    return %c0_i32, %c0_i32_0, %c0_i32_1 : i32, i32, i32
  }
  func.func @transform_8(%arg0: i32) -> (i32, i32, i32) {
    %c0_i32 = arith.constant 0 : i32
    %c0_i32_0 = arith.constant 0 : i32
    %c0_i32_1 = arith.constant 0 : i32
    %c0_i32_2 = arith.constant 0 : i32
    return %c0_i32, %c0_i32_0, %c0_i32_1 : i32, i32, i32
  }
}

</mosaic_0001>

<llo_original>
// kernel: encoder_forward.1
$region0: #{encoder_forward.1}
  #allocation0 [shape = 'u32[]', space=smem, size = 0x4, offset = 0x4, fixed_abs, tag = 'smem constant byte address 0x4 - core index']
  #allocation1 [shape = 'u32[144,128]{1,0:T(1,128)}', space=vmem, size = 0x12000, scoped, tag = 'internal scratch']
  %s0 = inlined_call_operand.vmem [shape: s32[2,8,1], index: 0, kind: input, shape index: {}]
  %s1 = inlined_call_operand.vmem [shape: f32[80,32], index: 1, kind: input, shape index: {}]
  %s2 = inlined_call_operand.vmem [shape: f32[1,32], index: 2, kind: input, shape index: {}]
  %s3 = inlined_call_operand.vmem [shape: f32[2,32,96], index: 3, kind: input, shape index: {}]
  %s4 = inlined_call_operand.vmem [shape: f32[2,32,96], index: 4, kind: input, shape index: {}]
  %s5 = inlined_call_operand.vmem [shape: f32[2,1,96], index: 5, kind: input, shape index: {}]
  %s6 = inlined_call_operand.vmem [shape: f32[2,1,32], index: 6, kind: input, shape index: {}]
  %s7 = inlined_call_operand.vmem [shape: f32[2,2,32], index: 7, kind: input, shape index: {}, may-alias: {7,8}]
  %s8 = inlined_call_operand.vmem [shape: f32[2,2,32], index: 8, kind: output, shape index: {}, may-alias: {7,8}]
  %s9 = sld [smem:[#allocation0]]
  $region42: #{encoder_forward.1} parent=0
    _
  %s11 = ssub.s32 1, %s9
  %s12 = scalar_select 0, %s11, %s9
  // Predicated region
  $region2: #{encoder_forward.1} parent=0 // pred_check
    _
  $region3: #{encoder_forward.1} parent=0 // pred_check_branch
    %14 = sbr.rel (0) target = $region5
  $region4: #{encoder_forward.1} parent=0 // pred_region
    _
  $region5: #{encoder_forward.1} parent=0 // pred_fallthru
    _
  // Predicated region
  $region6: #{encoder_forward.1} parent=0 // pred_check
    _
  $region7: #{encoder_forward.1} parent=0 // pred_check_branch
    %16 = sbr.rel (0) target = $region9
  $region8: #{encoder_forward.1} parent=0 // pred_region
    _
  $region9: #{encoder_forward.1} parent=0 // pred_fallthru
    _
  // Predicated region
  $region10: #{encoder_forward.1} parent=0 // pred_check
    _
  $region11: #{encoder_forward.1} parent=0 // pred_check_branch
    %18 = sbr.rel (0) target = $region13
  $region12: #{encoder_forward.1} parent=0 // pred_region
    _
  $region13: #{encoder_forward.1} parent=0 // pred_fallthru
    _
  // Predicated region
  $region14: #{encoder_forward.1} parent=0 // pred_check
    _
  $region15: #{encoder_forward.1} parent=0 // pred_check_branch
    %20 = sbr.rel (0) target = $region17
  $region16: #{encoder_forward.1} parent=0 // pred_region
    _
  $region17: #{encoder_forward.1} parent=0 // pred_fallthru
    _
  // Predicated region
  $region18: #{encoder_forward.1} parent=0 // pred_check
    _
  $region19: #{encoder_forward.1} parent=0 // pred_check_branch
    %22 = sbr.rel (0) target = $region21
  $region20: #{encoder_forward.1} parent=0 // pred_region
    _
  $region21: #{encoder_forward.1} parent=0 // pred_fallthru
    _
  // Predicated region
  $region22: #{encoder_forward.1} parent=0 // pred_check
    _
  $region23: #{encoder_forward.1} parent=0 // pred_check_branch
    %24 = sbr.rel (0) target = $region25
  $region24: #{encoder_forward.1} parent=0 // pred_region
    _
  $region25: #{encoder_forward.1} parent=0 // pred_fallthru
    _
  // Predicated region
  $region26: #{encoder_forward.1} parent=0 // pred_check
    _
  $region27: #{encoder_forward.1} parent=0 // pred_check_branch
    %26 = sbr.rel (0) target = $region29
  $region28: #{encoder_forward.1} parent=0 // pred_region
    _
  $region29: #{encoder_forward.1} parent=0 // pred_fallthru
    _
  // Predicated region
  $region30: #{encoder_forward.1} parent=0 // pred_check
    _
  $region31: #{encoder_forward.1} parent=0 // pred_check_branch
    %28 = sbr.rel (0) target = $region33
  $region32: #{encoder_forward.1} parent=0 // pred_region
    _
  $region33: #{encoder_forward.1} parent=0 // pred_fallthru
    _
  %v29 = vld [vmem:[%s0] sm:$0xff]
  %v30 = vld [vmem:[%s0 + $0x8] sm:$0xff]
  %v31 = vlaneseq
  %v32 = vand.u32 %v31, 127
  %33 = vset.pattern.permute.xlu0 0
  %34 = vperm.xlu0 %33, %v29
  %v35 = vpop.permute.xlu0 %34
  %36 = vset.pattern.permute.xlu0 0
  %37 = vperm.xlu0 %36, %v30
  %v38 = vpop.permute.xlu0 %37
  %vm39 = vcmp.eq.s32.totalorder %v35, %v32
  %vm40 = vcmp.eq.s32.totalorder %v38, %v32
  %v41 = vsel %vm39, 1, 0
  %v42 = vsel %vm40, 1, 0
  %v43 = vcvt.s32.f32 %v41
  %v44 = vcvt.s32.f32 %v42
  %vm45 = vcmask 654336
  %v46 = vsel %vm45, %v43, 0.0
  %v47 = vrot.slane %v46, 4
  %v48 = vadd.f32 %v46, %v47
  %v49 = vrot.slane %v48, 2
  %v50 = vadd.f32 %v48, %v49
  %v51 = vrot.slane %v50, 1
  %v52 = vadd.f32 %v50, %v51
  %v53 = vsel %vm45, %v44, 0.0
  %v54 = vrot.slane %v53, 4
  %v55 = vadd.f32 %v53, %v54
  %v56 = vrot.slane %v55, 2
  %v57 = vadd.f32 %v55, %v56
  %v58 = vrot.slane %v57, 1
  %v59 = vadd.f32 %v57, %v58
  %v60 = vld [vmem:[%s1] sm:$0xff]
  %v61 = vld [vmem:[%s1 + $0x8] sm:$0xff]
  %v62 = vld [vmem:[%s1 + $0x10] sm:$0xff]
  %v63 = vld [vmem:[%s1 + $0x18] sm:$0xff]
  %v64 = vld [vmem:[%s1 + $0x20] sm:$0xff]
  %v65 = vld [vmem:[%s1 + $0x28] sm:$0xff]
  %v66 = vld [vmem:[%s1 + $0x30] sm:$0xff]
  %v67 = vld [vmem:[%s1 + $0x38] sm:$0xff]
  %v68 = vld [vmem:[%s1 + $0x40] sm:$0xff]
  %v69 = vld [vmem:[%s1 + $0x48] sm:$0xff]
  %v70 = vld [vmem:[%s2] sm:$0x1]
  %v72 = vlaneseq
  %v73 = vshrl.u32 %v72, 7
  %v74 = vsub.s32 0, %v73
  %v75 = vrot.slane %v70, %v74
  %vm79 = vcmask 1041409
  %v80 = vsel %vm79, %v59, %v52
  %v81 = vsel %vm45, %v80, 0
  %83 = vmatprep.subr.mxu0 0.0
  %84 = vmatpush1.msra.mxu0 0.0
  %85 = vmatprep.subr.mxu0 0.0
  %86 = vmatpush1.msra.mxu0 0.0
  %87 = vmatprep.subr.mxu0 0.0
  %88 = vmatpush1.msra.mxu0 0.0
  %89 = vmatprep.subr.mxu0 0.0
  %90 = vmatpush1.msra.mxu0 0.0
  %91 = vmatprep.subr.mxu0 0.0
  %92 = vmatpush1.msra.mxu0 0.0
  %93 = vmatprep.subr.mxu0 0.0
  %94 = vmatpush1.msra.mxu0 0.0
  %95 = vmatprep.subr.mxu0 0.0
  %96 = vmatpush1.msra.mxu0 %v69
  %97 = vmatprep.subr.mxu0 0.0
  %98 = vmatpush1.msra.mxu0 %v68
  %99 = vmatprep.subr.mxu0 0.0
  %100 = vmatpush1.msra.mxu0 %v67
  %101 = vmatprep.subr.mxu0 0.0
  %102 = vmatpush1.msra.mxu0 %v66
  %103 = vmatprep.subr.mxu0 0.0
  %104 = vmatpush1.msra.mxu0 %v65
  %105 = vmatprep.subr.mxu0 0.0
  %106 = vmatpush1.msra.mxu0 %v64
  %107 = vmatprep.subr.mxu0 0.0
  %108 = vmatpush1.msra.mxu0 %v63
  %109 = vmatprep.subr.mxu0 0.0
  %110 = vmatpush1.msra.mxu0 %v62
  %111 = vmatprep.subr.mxu0 0.0
  %112 = vmatpush1.msra.mxu0 %v61
  %113 = vmatprep.subr.mxu0 0.0
  %114 = vmatpush1.msra.mxu0 %v60
  %115 = vmatprep.subr.mxu0 0.0
  %116 = vmatpush2.msra.mxu0 0.0
  %117 = vmatprep.subr.mxu0 0.0
  %118 = vmatpush2.msra.mxu0 0.0
  %119 = vmatprep.subr.mxu0 0.0
  %120 = vmatpush2.msra.mxu0 0.0
  %121 = vmatprep.subr.mxu0 0.0
  %122 = vmatpush2.msra.mxu0 0.0
  %123 = vmatprep.subr.mxu0 0.0
  %124 = vmatpush2.msra.mxu0 0.0
  %125 = vmatprep.subr.mxu0 0.0
  %126 = vmatpush2.msra.mxu0 0.0
  %127 = vmatprep.subr.mxu0 0.0
  %128 = vmatpush2.msra.mxu0 0.0
  %129 = vmatprep.subr.mxu0 0.0
  %130 = vmatpush2.msra.mxu0 0.0
  %131 = vmatprep.subr.mxu0 0.0
  %132 = vmatpush2.msra.mxu0 0.0
  %133 = vmatprep.subr.mxu0 0.0
  %134 = vmatpush2.msra.mxu0 0.0
  %135 = vmatprep.subr.mxu0 0.0
  %136 = vmatpush2.msra.mxu0 0.0
  %137 = vmatprep.subr.mxu0 0.0
  %138 = vmatpush2.msra.mxu0 0.0
  %139 = vmatprep.subr.mxu0 0.0
  %140 = vmatpush2.msra.mxu0 0.0
  %141 = vmatprep.subr.mxu0 0.0
  %142 = vmatpush2.msra.mxu0 0.0
  %143 = vmatprep.subr.mxu0 0.0
  %144 = vmatpush2.msra.mxu0 0.0
  %145 = vmatprep.subr.mxu0 0.0
  %146 = vmatpush2.msra.mxu0 0.0
  %147 = vmatprep.mubr.f32.mxu0 0.0
  %148 = vmatmul.mubr.f32.gmra.mxu0 %v81
  %v149 = vpop.f32.mrf.mxu0
  %v150 = vadd.f32 %v75, %v149
  %v151 = vpop.f32.mrf.mxu0
  %152 = vdwg.mxu0
  %v153 = vmax.f32 %v150, 0.0
  %v154 = vld [vmem:[%s7] sm:$0x3]
  %v155 = vld [vmem:[%s3] sm:$0xff]
  %v156 = vld [vmem:[%s3 + $0x8] sm:$0xff]
  %v157 = vld [vmem:[%s3 + $0x10] sm:$0xff]
  %v158 = vld [vmem:[%s3 + $0x18] sm:$0xff]
  %v159 = vld [vmem:[%s5] sm:$0x1]
  %v161 = vlaneseq
  %v162 = vshrl.u32 %v161, 7
  %v163 = vsub.s32 0, %v162
  %v164 = vrot.slane %v159, %v163
  %vm166 = vcmask 261120
  %v168 = vsel %vm166, %v153, 0
  %170 = vmatprep.subr.mxu0 0.0
  %171 = vmatpush1.msra.mxu0 0.0
  %172 = vmatprep.subr.mxu0 0.0
  %173 = vmatpush1.msra.mxu0 0.0
  %174 = vmatprep.subr.mxu0 0.0
  %175 = vmatpush1.msra.mxu0 0.0
  %176 = vmatprep.subr.mxu0 0.0
  %177 = vmatpush1.msra.mxu0 0.0
  %178 = vmatprep.subr.mxu0 0.0
  %179 = vmatpush1.msra.mxu0 0.0
  %180 = vmatprep.subr.mxu0 0.0
  %181 = vmatpush1.msra.mxu0 0.0
  %182 = vmatprep.subr.mxu0 0.0
  %183 = vmatpush1.msra.mxu0 0.0
  %184 = vmatprep.subr.mxu0 0.0
  %185 = vmatpush1.msra.mxu0 0.0
  %186 = vmatprep.subr.mxu0 0.0
  %187 = vmatpush1.msra.mxu0 0.0
  %188 = vmatprep.subr.mxu0 0.0
  %189 = vmatpush1.msra.mxu0 0.0
  %190 = vmatprep.subr.mxu0 0.0
  %191 = vmatpush1.msra.mxu0 0.0
  %192 = vmatprep.subr.mxu0 0.0
  %193 = vmatpush1.msra.mxu0 0.0
  %194 = vmatprep.subr.mxu0 0.0
  %195 = vmatpush1.msra.mxu0 %v158
  %196 = vmatprep.subr.mxu0 0.0
  %197 = vmatpush1.msra.mxu0 %v157
  %198 = vmatprep.subr.mxu0 0.0
  %199 = vmatpush1.msra.mxu0 %v156
  %200 = vmatprep.subr.mxu0 0.0
  %201 = vmatpush1.msra.mxu0 %v155
  %202 = vmatprep.subr.mxu0 0.0
  %203 = vmatpush2.msra.mxu0 0.0
  %204 = vmatprep.subr.mxu0 0.0
  %205 = vmatpush2.msra.mxu0 0.0
  %206 = vmatprep.subr.mxu0 0.0
  %207 = vmatpush2.msra.mxu0 0.0
  %208 = vmatprep.subr.mxu0 0.0
  %209 = vmatpush2.msra.mxu0 0.0
  %210 = vmatprep.subr.mxu0 0.0
  %211 = vmatpush2.msra.mxu0 0.0
  %212 = vmatprep.subr.mxu0 0.0
  %213 = vmatpush2.msra.mxu0 0.0
  %214 = vmatprep.subr.mxu0 0.0
  %215 = vmatpush2.msra.mxu0 0.0
  %216 = vmatprep.subr.mxu0 0.0
  %217 = vmatpush2.msra.mxu0 0.0
  %218 = vmatprep.subr.mxu0 0.0
  %219 = vmatpush2.msra.mxu0 0.0
  %220 = vmatprep.subr.mxu0 0.0
  %221 = vmatpush2.msra.mxu0 0.0
  %222 = vmatprep.subr.mxu0 0.0
  %223 = vmatpush2.msra.mxu0 0.0
  %224 = vmatprep.subr.mxu0 0.0
  %225 = vmatpush2.msra.mxu0 0.0
  %226 = vmatprep.subr.mxu0 0.0
  %227 = vmatpush2.msra.mxu0 0.0
  %228 = vmatprep.subr.mxu0 0.0
  %229 = vmatpush2.msra.mxu0 0.0
  %230 = vmatprep.subr.mxu0 0.0
  %231 = vmatpush2.msra.mxu0 0.0
  %232 = vmatprep.subr.mxu0 0.0
  %233 = vmatpush2.msra.mxu0 0.0
  %234 = vmatprep.mubr.f32.mxu0 0.0
  %235 = vmatmul.mubr.f32.gmra.mxu0 %v168
  %v236 = vpop.f32.mrf.mxu0
  %v237 = vadd.f32 %v164, %v236
  %v238 = vpop.f32.mrf.mxu0
  %239 = vdwg.mxu0
  %v240 = vld [vmem:[%s4] sm:$0xff]
  %v241 = vld [vmem:[%s4 + $0x8] sm:$0xff]
  %v242 = vld [vmem:[%s4 + $0x10] sm:$0xff]
  %v243 = vld [vmem:[%s4 + $0x18] sm:$0xff]
  %v245 = vsel %vm166, %v154, 0
  %247 = vmatprep.subr.mxu0 0.0
  %248 = vmatpush1.msra.mxu0 0.0
  %249 = vmatprep.subr.mxu0 0.0
  %250 = vmatpush1.msra.mxu0 0.0
  %251 = vmatprep.subr.mxu0 0.0
  %252 = vmatpush1.msra.mxu0 0.0
  %253 = vmatprep.subr.mxu0 0.0
  %254 = vmatpush1.msra.mxu0 0.0
  %255 = vmatprep.subr.mxu0 0.0
  %256 = vmatpush1.msra.mxu0 0.0
  %257 = vmatprep.subr.mxu0 0.0
  %258 = vmatpush1.msra.mxu0 0.0
  %259 = vmatprep.subr.mxu0 0.0
  %260 = vmatpush1.msra.mxu0 0.0
  %261 = vmatprep.subr.mxu0 0.0
  %262 = vmatpush1.msra.mxu0 0.0
  %263 = vmatprep.subr.mxu0 0.0
  %264 = vmatpush1.msra.mxu0 0.0
  %265 = vmatprep.subr.mxu0 0.0
  %266 = vmatpush1.msra.mxu0 0.0
  %267 = vmatprep.subr.mxu0 0.0
  %268 = vmatpush1.msra.mxu0 0.0
  %269 = vmatprep.subr.mxu0 0.0
  %270 = vmatpush1.msra.mxu0 0.0
  %271 = vmatprep.subr.mxu0 0.0
  %272 = vmatpush1.msra.mxu0 %v243
  %273 = vmatprep.subr.mxu0 0.0
  %274 = vmatpush1.msra.mxu0 %v242
  %275 = vmatprep.subr.mxu0 0.0
  %276 = vmatpush1.msra.mxu0 %v241
  %277 = vmatprep.subr.mxu0 0.0
  %278 = vmatpush1.msra.mxu0 %v240
  %279 = vmatprep.subr.mxu0 0.0
  %280 = vmatpush2.msra.mxu0 0.0
  %281 = vmatprep.subr.mxu0 0.0
  %282 = vmatpush2.msra.mxu0 0.0
  %283 = vmatprep.subr.mxu0 0.0
  %284 = vmatpush2.msra.mxu0 0.0
  %285 = vmatprep.subr.mxu0 0.0
  %286 = vmatpush2.msra.mxu0 0.0
  %287 = vmatprep.subr.mxu0 0.0
  %288 = vmatpush2.msra.mxu0 0.0
  %289 = vmatprep.subr.mxu0 0.0
  %290 = vmatpush2.msra.mxu0 0.0
  %291 = vmatprep.subr.mxu0 0.0
  %292 = vmatpush2.msra.mxu0 0.0
  %293 = vmatprep.subr.mxu0 0.0
  %294 = vmatpush2.msra.mxu0 0.0
  %295 = vmatprep.subr.mxu0 0.0
  %296 = vmatpush2.msra.mxu0 0.0
  %297 = vmatprep.subr.mxu0 0.0
  %298 = vmatpush2.msra.mxu0 0.0
  %299 = vmatprep.subr.mxu0 0.0
  %300 = vmatpush2.msra.mxu0 0.0
  %301 = vmatprep.subr.mxu0 0.0
  %302 = vmatpush2.msra.mxu0 0.0
  %303 = vmatprep.subr.mxu0 0.0
  %304 = vmatpush2.msra.mxu0 0.0
  %305 = vmatprep.subr.mxu0 0.0
  %306 = vmatpush2.msra.mxu0 0.0
  %307 = vmatprep.subr.mxu0 0.0
  %308 = vmatpush2.msra.mxu0 0.0
  %309 = vmatprep.subr.mxu0 0.0
  %310 = vmatpush2.msra.mxu0 0.0
  %311 = vmatprep.mubr.f32.mxu0 0.0
  %312 = vmatmul.mubr.f32.gmra.mxu0 %v245
  %v313 = vpop.f32.mrf.mxu0
  %v314 = vadd.f32 0.0, %v313
  %v315 = vpop.f32.mrf.mxu0
  %316 = vdwg.mxu0
  %v317 = vadd.f32 %v237, %v314
  %v318 = vxor.u32 %v317, 2147483648
  %v319 = vmul.f32 %v318, 1.442695
  %v320 = vpow.pop %v319
  %v321 = vadd.f32 %v320, 1.0
  %v322 = vrcp.pop %v321
  %v323 = vmul.f32 1.0, %v322
  %v324 = vld [vmem:[%s6] sm:$0x1]
  %v326 = vlaneseq
  %v327 = vshrl.u32 %v326, 7
  %v328 = vsub.s32 0, %v327
  %v329 = vrot.slane %v324, %v328
  %330 = vrot.lane.b32.xlu0 %v329, 64
  %v331 = vpop.permute.xlu0 %330
  %v333 = vadd.f32 %v314, %v331
  %335 = vrot.lane.b32.xlu0 %v333, 64
  %v336 = vpop.permute.xlu0 %335
  %v338 = vmul.f32 %v323, %v336
  %340 = vrot.lane.b32.xlu0 %v338, 64
  %v341 = vpop.permute.xlu0 %340
  %v343 = vadd.f32 %v237, %v341
  %v344 = vtanh.pop %v343
  %v345 = vsub.f32 1.0, %v323
  %347 = vrot.lane.b32.xlu0 %v344, 96
  %v348 = vpop.permute.xlu0 %347
  %v350 = vmul.f32 %v345, %v348
  %351 = vrot.lane.b32.xlu0 %v154, 32
  %v352 = vpop.permute.xlu0 %351
  %v354 = vmul.f32 %v323, %v352
  %v355 = vadd.f32 %v350, %v354
  %357 = vrot.lane.b32.xlu0 %v355, 96
  %v358 = vpop.permute.xlu0 %357
  %vm360 = vcmask 254976
  %361 = vst.msk [vmem:[%s8] sm:$0x3] %vm360, %v358
  %s362 = scalar_lea.vmem %s7, 2
  %v363 = vld [vmem:[%s362] sm:$0x3]
  %s364 = scalar_lea.vmem %s3, 32
  %v365 = vld [vmem:[%s364] sm:$0xff]
  %v366 = vld [vmem:[%s364 + $0x8] sm:$0xff]
  %v367 = vld [vmem:[%s364 + $0x10] sm:$0xff]
  %v368 = vld [vmem:[%s364 + $0x18] sm:$0xff]
  %s369 = scalar_lea.vmem %s5, 1
  %v370 = vld [vmem:[%s369] sm:$0x1]
  %v372 = vlaneseq
  %v373 = vshrl.u32 %v372, 7
  %v374 = vsub.s32 0, %v373
  %v375 = vrot.slane %v370, %v374
  %v377 = vsel %vm166, %v358, 0
  %379 = vmatprep.subr.mxu0 0.0
  %380 = vmatpush1.msra.mxu0 0.0
  %381 = vmatprep.subr.mxu0 0.0
  %382 = vmatpush1.msra.mxu0 0.0
  %383 = vmatprep.subr.mxu0 0.0
  %384 = vmatpush1.msra.mxu0 0.0
  %385 = vmatprep.subr.mxu0 0.0
  %386 = vmatpush1.msra.mxu0 0.0
  %387 = vmatprep.subr.mxu0 0.0
  %388 = vmatpush1.msra.mxu0 0.0
  %389 = vmatprep.subr.mxu0 0.0
  %390 = vmatpush1.msra.mxu0 0.0
  %391 = vmatprep.subr.mxu0 0.0
  %392 = vmatpush1.msra.mxu0 0.0
  %393 = vmatprep.subr.mxu0 0.0
  %394 = vmatpush1.msra.mxu0 0.0
  %395 = vmatprep.subr.mxu0 0.0
  %396 = vmatpush1.msra.mxu0 0.0
  %397 = vmatprep.subr.mxu0 0.0
  %398 = vmatpush1.msra.mxu0 0.0
  %399 = vmatprep.subr.mxu0 0.0
  %400 = vmatpush1.msra.mxu0 0.0
  %401 = vmatprep.subr.mxu0 0.0
  %402 = vmatpush1.msra.mxu0 0.0
  %403 = vmatprep.subr.mxu0 0.0
  %404 = vmatpush1.msra.mxu0 %v368
  %405 = vmatprep.subr.mxu0 0.0
  %406 = vmatpush1.msra.mxu0 %v367
  %407 = vmatprep.subr.mxu0 0.0
  %408 = vmatpush1.msra.mxu0 %v366
  %409 = vmatprep.subr.mxu0 0.0
  %410 = vmatpush1.msra.mxu0 %v365
  %411 = vmatprep.subr.mxu0 0.0
  %412 = vmatpush2.msra.mxu0 0.0
  %413 = vmatprep.subr.mxu0 0.0
  %414 = vmatpush2.msra.mxu0 0.0
  %415 = vmatprep.subr.mxu0 0.0
  %416 = vmatpush2.msra.mxu0 0.0
  %417 = vmatprep.subr.mxu0 0.0
  %418 = vmatpush2.msra.mxu0 0.0
  %419 = vmatprep.subr.mxu0 0.0
  %420 = vmatpush2.msra.mxu0 0.0
  %421 = vmatprep.subr.mxu0 0.0
  %422 = vmatpush2.msra.mxu0 0.0
  %423 = vmatprep.subr.mxu0 0.0
  %424 = vmatpush2.msra.mxu0 0.0
  %425 = vmatprep.subr.mxu0 0.0
  %426 = vmatpush2.msra.mxu0 0.0
  %427 = vmatprep.subr.mxu0 0.0
  %428 = vmatpush2.msra.mxu0 0.0
  %429 = vmatprep.subr.mxu0 0.0
  %430 = vmatpush2.msra.mxu0 0.0
  %431 = vmatprep.subr.mxu0 0.0
  %432 = vmatpush2.msra.mxu0 0.0
  %433 = vmatprep.subr.mxu0 0.0
  %434 = vmatpush2.msra.mxu0 0.0
  %435 = vmatprep.subr.mxu0 0.0
  %436 = vmatpush2.msra.mxu0 0.0
  %437 = vmatprep.subr.mxu0 0.0
  %438 = vmatpush2.msra.mxu0 0.0
  %439 = vmatprep.subr.mxu0 0.0
  %440 = vmatpush2.msra.mxu0 0.0
  %441 = vmatprep.subr.mxu0 0.0
  %442 = vmatpush2.msra.mxu0 0.0
  %443 = vmatprep.mubr.f32.mxu0 0.0
  %444 = vmatmul.mubr.f32.gmra.mxu0 %v377
  %v445 = vpop.f32.mrf.mxu0
  %v446 = vadd.f32 %v375, %v445
  %v447 = vpop.f32.mrf.mxu0
  %448 = vdwg.mxu0
  %s449 = scalar_lea.vmem %s4, 32
  %v450 = vld [vmem:[%s449] sm:$0xff]
  %v451 = vld [vmem:[%s449 + $0x8] sm:$0xff]
  %v452 = vld [vmem:[%s449 + $0x10] sm:$0xff]
  %v453 = vld [vmem:[%s449 + $0x18] sm:$0xff]
  %v455 = vsel %vm166, %v363, 0
  %457 = vmatprep.subr.mxu0 0.0
  %458 = vmatpush1.msra.mxu0 0.0
  %459 = vmatprep.subr.mxu0 0.0
  %460 = vmatpush1.msra.mxu0 0.0
  %461 = vmatprep.subr.mxu0 0.0
  %462 = vmatpush1.msra.mxu0 0.0
  %463 = vmatprep.subr.mxu0 0.0
  %464 = vmatpush1.msra.mxu0 0.0
  %465 = vmatprep.subr.mxu0 0.0
  %466 = vmatpush1.msra.mxu0 0.0
  %467 = vmatprep.subr.mxu0 0.0
  %468 = vmatpush1.msra.mxu0 0.0
  %469 = vmatprep.subr.mxu0 0.0
  %470 = vmatpush1.msra.mxu0 0.0
  %471 = vmatprep.subr.mxu0 0.0
  %472 = vmatpush1.msra.mxu0 0.0
  %473 = vmatprep.subr.mxu0 0.0
  %474 = vmatpush1.msra.mxu0 0.0
  %475 = vmatprep.subr.mxu0 0.0
  %476 = vmatpush1.msra.mxu0 0.0
  %477 = vmatprep.subr.mxu0 0.0
  %478 = vmatpush1.msra.mxu0 0.0
  %479 = vmatprep.subr.mxu0 0.0
  %480 = vmatpush1.msra.mxu0 0.0
  %481 = vmatprep.subr.mxu0 0.0
  %482 = vmatpush1.msra.mxu0 %v453
  %483 = vmatprep.subr.mxu0 0.0
  %484 = vmatpush1.msra.mxu0 %v452
  %485 = vmatprep.subr.mxu0 0.0
  %486 = vmatpush1.msra.mxu0 %v451
  %487 = vmatprep.subr.mxu0 0.0
  %488 = vmatpush1.msra.mxu0 %v450
  %489 = vmatprep.subr.mxu0 0.0
  %490 = vmatpush2.msra.mxu0 0.0
  %491 = vmatprep.subr.mxu0 0.0
  %492 = vmatpush2.msra.mxu0 0.0
  %493 = vmatprep.subr.mxu0 0.0
  %494 = vmatpush2.msra.mxu0 0.0
  %495 = vmatprep.subr.mxu0 0.0
  %496 = vmatpush2.msra.mxu0 0.0
  %497 = vmatprep.subr.mxu0 0.0
  %498 = vmatpush2.msra.mxu0 0.0
  %499 = vmatprep.subr.mxu0 0.0
  %500 = vmatpush2.msra.mxu0 0.0
  %501 = vmatprep.subr.mxu0 0.0
  %502 = vmatpush2.msra.mxu0 0.0
  %503 = vmatprep.subr.mxu0 0.0
  %504 = vmatpush2.msra.mxu0 0.0
  %505 = vmatprep.subr.mxu0 0.0
  %506 = vmatpush2.msra.mxu0 0.0
  %507 = vmatprep.subr.mxu0 0.0
  %508 = vmatpush2.msra.mxu0 0.0
  %509 = vmatprep.subr.mxu0 0.0
  %510 = vmatpush2.msra.mxu0 0.0
  %511 = vmatprep.subr.mxu0 0.0
  %512 = vmatpush2.msra.mxu0 0.0
  %513 = vmatprep.subr.mxu0 0.0
  %514 = vmatpush2.msra.mxu0 0.0
  %515 = vmatprep.subr.mxu0 0.0
  %516 = vmatpush2.msra.mxu0 0.0
  %517 = vmatprep.subr.mxu0 0.0
  %518 = vmatpush2.msra.mxu0 0.0
  %519 = vmatprep.subr.mxu0 0.0
  %520 = vmatpush2.msra.mxu0 0.0
  %521 = vmatprep.mubr.f32.mxu0 0.0
  %522 = vmatmul.mubr.f32.gmra.mxu0 %v455
  %v523 = vpop.f32.mrf.mxu0
  %v524 = vadd.f32 0.0, %v523
  %v525 = vpop.f32.mrf.mxu0
  %526 = vdwg.mxu0
  %v527 = vadd.f32 %v446, %v524
  %v528 = vxor.u32 %v527, 2147483648
  %v529 = vmul.f32 %v528, 1.442695
  %v530 = vpow.pop %v529
  %v531 = vadd.f32 %v530, 1.0
  %v532 = vrcp.pop %v531
  %v533 = vmul.f32 1.0, %v532
  %s534 = scalar_lea.vmem %s6, 1
  %v535 = vld [vmem:[%s534] sm:$0x1]
  %v537 = vlaneseq
  %v538 = vshrl.u32 %v537, 7
  %v539 = vsub.s32 0, %v538
  %v540 = vrot.slane %v535, %v539
  %541 = vrot.lane.b32.xlu0 %v540, 64
  %v542 = vpop.permute.xlu0 %541
  %v544 = vadd.f32 %v524, %v542
  %546 = vrot.lane.b32.xlu0 %v544, 64
  %v547 = vpop.permute.xlu0 %546
  %v549 = vmul.f32 %v533, %v547
  %551 = vrot.lane.b32.xlu0 %v549, 64
  %v552 = vpop.permute.xlu0 %551
  %v554 = vadd.f32 %v446, %v552
  %v555 = vtanh.pop %v554
  %v556 = vsub.f32 1.0, %v533
  %558 = vrot.lane.b32.xlu0 %v555, 96
  %v559 = vpop.permute.xlu0 %558
  %v561 = vmul.f32 %v556, %v559
  %562 = vrot.lane.b32.xlu0 %v363, 32
  %v563 = vpop.permute.xlu0 %562
  %v565 = vmul.f32 %v533, %v563
  %v566 = vadd.f32 %v561, %v565
  %568 = vrot.lane.b32.xlu0 %v566, 96
  %v569 = vpop.permute.xlu0 %568
  %s571 = scalar_lea.vmem %s8, 2
  %572 = vst.msk [vmem:[%s571] sm:$0x3] %vm360, %v569
  // Predicated region
  $region34: #{encoder_forward.1} parent=0 // pred_check
    _
  $region35: #{encoder_forward.1} parent=0 // pred_check_branch
    %574 = sbr.rel (0) target = $region37
  $region36: #{encoder_forward.1} parent=0 // pred_region
    _
  $region37: #{encoder_forward.1} parent=0 // pred_fallthru
    _
  // Predicated region
  $region38: #{encoder_forward.1} parent=0 // pred_check
    _
  $region39: #{encoder_forward.1} parent=0 // pred_check_branch
    %576 = sbr.rel (0) target = $region41
  $region40: #{encoder_forward.1} parent=0 // pred_region
    _
  $region41: #{encoder_forward.1} parent=0 // pred_fallthru
    _

</llo_original>
